<compile_context>
chip_gen: v5e
topology: v5e:2x2
jax: 0.10.0
libtpu: 0.0.40
codegen_flags: <defaults>
</compile_context>

<pallas_src>
import functools

import jax
import jax.numpy as jnp
from jax.experimental import pallas as pl
from jax.experimental.pallas import tpu as pltpu  # noqa: F401  (kept for explicit TPU backend use)


def _mlp_policy_kernel(num_hid_layers, ob_ref, w_ref, b_ref, out_ref):
    """Single-block kernel.

    ob_ref : [B, 128]   bf16, features in lanes [0:ob_dim), zero-padded.
    w_ref  : [(L+3)*128, 128] bf16 packed weight slab (see pack_params).
    b_ref  : [n_brows, 128]   f32 packed bias slab (one row per layer).
    out_ref: [B, 128]   f32, lanes [0:ac_dim) = mean, lane ac_dim = vpred.
    """
    L = num_hid_layers

    x = ob_ref[...]  # [B, 128] bf16

    # ---- fused layer 0: critic (out lanes [0:H)) + actor layer 0 (lanes [H:2H)) ----
    h0 = jnp.dot(x, w_ref[0:128, :], preferred_element_type=jnp.float32)
    h0 = jnp.maximum(h0 + b_ref[0:1, :], 0.0)
    h01 = h0.astype(jnp.bfloat16)  # keep around: critic half feeds vpred at the end

    # ---- remaining actor layers 1..L ----
    # Packed block for layer 1 reads lanes [H:2H) of h01 (the actor half);
    # blocks for layers >= 2 read lanes [0:H). Unused lanes are zero by construction.
    h = h01
    for i in range(1, L + 1):
        off = i * 128
        a = jnp.dot(h, w_ref[off:off + 128, :], preferred_element_type=jnp.float32)
        h = jnp.maximum(a + b_ref[i:i + 1, :], 0.0).astype(jnp.bfloat16)

    # ---- fused output projection: lane-dense [B, 128] store ----
    # mean(h_actor) lands in lanes [0:ac_dim); vpred(h_critic) lands in lane ac_dim.
    off_v = (L + 1) * 128
    off_m = (L + 2) * 128
    out = (jnp.dot(h, w_ref[off_m:off_m + 128, :], preferred_element_type=jnp.float32)
           + jnp.dot(h01, w_ref[off_v:off_v + 128, :], preferred_element_type=jnp.float32)
           + b_ref[L + 1:L + 2, :])
    out_ref[...] = out.astype(out_ref.dtype)


def init_params(key, ob_dim, hid_size, num_hid_layers, ac_dim, dtype=jnp.float32):
    """Deterministic synthetic parameters, same shapes as the nn.Module.

    Linear weights are stored pre-transposed as [in, out]; biases as [1, out].
    """
    n_actor = num_hid_layers + 1
    keys = jax.random.split(key, 2 * (n_actor + 3))
    ki = iter(keys)

    def linear(in_d, out_d):
        w = jax.random.normal(next(ki), (in_d, out_d), dtype) * 0.1
        b = jax.random.normal(next(ki), (1, out_d), dtype) * 0.01
        return w, b

    return {
        "critic": linear(ob_dim, hid_size),
        "vpred": linear(hid_size, 1),
        "actor": [linear(ob_dim, hid_size)]
                 + [linear(hid_size, hid_size) for _ in range(num_hid_layers)],
        "mean": linear(hid_size, ac_dim),
        "logstd": jnp.zeros((1, ac_dim), dtype),
    }


def pack_params(params, ob_dim, hid, ac_dim, num_hid_layers):
    """Pack all Linear layers into one bf16 weight slab + one f32 bias slab.

    Weight slab layout ([ (L+3)*128, 128 ], one 128-row block per matmul):
      block 0      : rows [0:ob_dim), cols [0:H)=critic_w, [H:2H)=actor_w0 (fused)
      block i=1..L : actor_wi; layer 1 occupies rows [H:2H) (reads actor half of h01),
                     layers >= 2 occupy rows [0:H); output cols [0:H)
      block L+1    : vpred_w in rows [0:H), column ac_dim      (reads critic half of h01)
      block L+2    : mean_w  in rows [0:H) (or [H:2H) if L==0), cols [0:ac_dim)
    Bias slab: row 0 = fused (critic_b | actor_b0), row i = actor_b_i,
               row L+1 = (mean_b | vpred_b at lane ac_dim).
    """
    L = num_hid_layers
    assert 2 * hid <= 128 and ob_dim <= 128 and ac_dim + 1 <= 128, \
        "single-slab packing assumes hid_size <= 64, ob_dim <= 128, ac_dim < 128"

    n_blocks = L + 3
    W = jnp.zeros((n_blocks * 128, 128), jnp.float32)
    n_brows = max(8, ((L + 2 + 7) // 8) * 8)
    Bv = jnp.zeros((n_brows, 128), jnp.float32)

    cw, cb = params["critic"]
    vw, vb = params["vpred"]
    mw, mb = params["mean"]
    actor = params["actor"]

    # block 0: fused critic + actor layer 0
    W = W.at[0:ob_dim, 0:hid].set(cw)
    W = W.at[0:ob_dim, hid:2 * hid].set(actor[0][0])
    Bv = Bv.at[0, 0:hid].set(cb[0])
    Bv = Bv.at[0, hid:2 * hid].set(actor[0][1][0])

    # blocks 1..L: remaining actor layers
    for i in range(1, L + 1):
        off = i * 128
        r0 = hid if i == 1 else 0
        W = W.at[off + r0:off + r0 + hid, 0:hid].set(actor[i][0])
        Bv = Bv.at[i, 0:hid].set(actor[i][1][0])

    # block L+1: vpred head (from critic half of h01) -> lane ac_dim
    off_v = (L + 1) * 128
    W = W.at[off_v:off_v + hid, ac_dim:ac_dim + 1].set(vw)

    # block L+2: mean head (from final actor hidden) -> lanes [0:ac_dim)
    off_m = (L + 2) * 128
    r0 = hid if L == 0 else 0
    W = W.at[off_m + r0:off_m + r0 + hid, 0:ac_dim].set(mw)
    Bv = Bv.at[L + 1, 0:ac_dim].set(mb[0])
    Bv = Bv.at[L + 1, ac_dim].set(vb[0, 0])

    return W.astype(jnp.bfloat16), Bv


def mlp_policy_forward(ob, params, num_hid_layers):
    B, D = ob.shape
    hid = params["critic"][0].shape[1]
    ac_dim = params["mean"][0].shape[1]
    out_dtype = ob.dtype

    # NOTE: in a real policy pack_params() is one-time init-side prep, not per step.
    w_slab, b_slab = pack_params(params, D, hid, ac_dim, num_hid_layers)

    # Lane-dense, bf16 observation block (features zero-padded to 128 lanes).
    ob_p = jnp.zeros((B, 128), jnp.bfloat16).at[:, :D].set(ob.astype(jnp.bfloat16))

    kernel = functools.partial(_mlp_policy_kernel, num_hid_layers)
    # Grid-less call: whole arrays become single VMEM-resident blocks.
    out = pl.pallas_call(
        kernel,
        out_shape=jax.ShapeDtypeStruct((B, 128), jnp.float32),
    )(ob_p, w_slab, b_slab)

    mean = out[:, :ac_dim].astype(out_dtype)
    vpred = out[:, ac_dim:ac_dim + 1].astype(out_dtype)
    logstd = params["logstd"]  # parameter passthrough (no compute), plain JAX
    return mean, logstd, vpred


def _reference_forward(ob, params):
    cw, cb = params["critic"]
    vw, vb = params["vpred"]
    mw, mb = params["mean"]
    h_c = jnp.maximum(ob @ cw + cb, 0.0)
    vpred = h_c @ vw + vb
    h = ob
    for w, b in params["actor"]:
        h = jnp.maximum(h @ w + b, 0.0)
    mean = h @ mw + mb
    return mean, params["logstd"], vpred


if __name__ == "__main__":
    # Small shapes consistent with the module: ob_space = Box(16,), hid=32,
    # num_hid_layers=2, action dim = 4 (pdtype.param_shape()[0] // 2).
    B, OB_DIM, HID, NUM_HID_LAYERS, AC_DIM = 8, 16, 32, 2, 4

    key = jax.random.PRNGKey(0)
    k_param, k_ob = jax.random.split(key)
    params = init_params(k_param, OB_DIM, HID, NUM_HID_LAYERS, AC_DIM)
    ob = jax.random.normal(k_ob, (B, OB_DIM), jnp.float32)

    mean, logstd, vpred = mlp_policy_forward(ob, params, NUM_HID_LAYERS)
    jax.block_until_ready((mean, logstd, vpred))

    mean_r, logstd_r, vpred_r = _reference_forward(ob, params)
    assert mean.shape == (B, AC_DIM) and vpred.shape == (B, 1) and logstd.shape == (1, AC_DIM)
    # bf16 weights/activations with f32 accumulation -> loosened tolerances.
    assert jnp.allclose(mean, mean_r, atol=3e-2, rtol=3e-2)
    assert jnp.allclose(vpred, vpred_r, atol=3e-2, rtol=3e-2)
    assert jnp.allclose(logstd, logstd_r)

    print("KERNEL_OK")
</pallas_src>

<mosaic_0001>
module attributes {stable_mosaic.version = 11 : i64} {
  func.func @_mlp_policy_kernel(%arg0: memref<8x128xbf16, #tpu.memory_space<vmem>>, %arg1: memref<640x128xbf16, #tpu.memory_space<vmem>>, %arg2: memref<8x128xf32, #tpu.memory_space<vmem>>, %arg3: memref<8x128xf32, #tpu.memory_space<vmem>>) attributes {dimension_semantics = [], scalar_prefetch = 0 : i64, scratch_operands = 0 : i64, tpu.core_type = #tpu.core_type<tc>} {
    %c0 = arith.constant 0 : index
    %c0_0 = arith.constant 0 : index
    %0 = vector.load %arg0[%c0, %c0_0] : memref<8x128xbf16, #tpu.memory_space<vmem>>, vector<8x128xbf16>
    %c0_1 = arith.constant 0 : index
    %c0_2 = arith.constant 0 : index
    %1 = vector.load %arg1[%c0_1, %c0_2] : memref<640x128xbf16, #tpu.memory_space<vmem>>, vector<128x128xbf16>
    %cst = arith.constant dense<0.000000e+00> : vector<8x128xf32>
    %2 = tpu.matmul %0, %1, %cst {dimension_numbers = #tpu.dot_dimension_numbers<[1], [0], [0], [1], [0, 0, 1, 1], [], []>} : vector<8x128xbf16>, vector<128x128xbf16>, vector<8x128xf32> -> vector<8x128xf32>
    %c0_3 = arith.constant 0 : index
    %c0_4 = arith.constant 0 : index
    %3 = vector.load %arg2[%c0_3, %c0_4] : memref<8x128xf32, #tpu.memory_space<vmem>>, vector<1x128xf32>
    %4 = vector.broadcast %3 : vector<1x128xf32> to vector<8x128xf32>
    %5 = arith.addf %2, %4 : vector<8x128xf32>
    %cst_5 = arith.constant 0.000000e+00 : f32
    %6 = vector.broadcast %cst_5 : f32 to vector<8x128xf32>
    %7 = arith.maximumf %5, %6 : vector<8x128xf32>
    %8 = arith.truncf %7 : vector<8x128xf32> to vector<8x128xbf16>
    %c128 = arith.constant 128 : index
    %c0_6 = arith.constant 0 : index
    %9 = vector.load %arg1[%c128, %c0_6] : memref<640x128xbf16, #tpu.memory_space<vmem>>, vector<128x128xbf16>
    %cst_7 = arith.constant dense<0.000000e+00> : vector<8x128xf32>
    %10 = tpu.matmul %8, %9, %cst_7 {dimension_numbers = #tpu.dot_dimension_numbers<[1], [0], [0], [1], [0, 0, 1, 1], [], []>} : vector<8x128xbf16>, vector<128x128xbf16>, vector<8x128xf32> -> vector<8x128xf32>
    %c1 = arith.constant 1 : index
    %c0_8 = arith.constant 0 : index
    %11 = vector.load %arg2[%c1, %c0_8] : memref<8x128xf32, #tpu.memory_space<vmem>>, vector<1x128xf32>
    %12 = vector.broadcast %11 : vector<1x128xf32> to vector<8x128xf32>
    %13 = arith.addf %10, %12 : vector<8x128xf32>
    %cst_9 = arith.constant 0.000000e+00 : f32
    %14 = vector.broadcast %cst_9 : f32 to vector<8x128xf32>
    %15 = arith.maximumf %13, %14 : vector<8x128xf32>
    %16 = arith.truncf %15 : vector<8x128xf32> to vector<8x128xbf16>
    %c256 = arith.constant 256 : index
    %c0_10 = arith.constant 0 : index
    %17 = vector.load %arg1[%c256, %c0_10] : memref<640x128xbf16, #tpu.memory_space<vmem>>, vector<128x128xbf16>
    %cst_11 = arith.constant dense<0.000000e+00> : vector<8x128xf32>
    %18 = tpu.matmul %16, %17, %cst_11 {dimension_numbers = #tpu.dot_dimension_numbers<[1], [0], [0], [1], [0, 0, 1, 1], [], []>} : vector<8x128xbf16>, vector<128x128xbf16>, vector<8x128xf32> -> vector<8x128xf32>
    %c2 = arith.constant 2 : index
    %c0_12 = arith.constant 0 : index
    %19 = vector.load %arg2[%c2, %c0_12] : memref<8x128xf32, #tpu.memory_space<vmem>>, vector<1x128xf32>
    %20 = vector.broadcast %19 : vector<1x128xf32> to vector<8x128xf32>
    %21 = arith.addf %18, %20 : vector<8x128xf32>
    %cst_13 = arith.constant 0.000000e+00 : f32
    %22 = vector.broadcast %cst_13 : f32 to vector<8x128xf32>
    %23 = arith.maximumf %21, %22 : vector<8x128xf32>
    %24 = arith.truncf %23 : vector<8x128xf32> to vector<8x128xbf16>
    %c512 = arith.constant 512 : index
    %c0_14 = arith.constant 0 : index
    %25 = vector.load %arg1[%c512, %c0_14] : memref<640x128xbf16, #tpu.memory_space<vmem>>, vector<128x128xbf16>
    %cst_15 = arith.constant dense<0.000000e+00> : vector<8x128xf32>
    %26 = tpu.matmul %24, %25, %cst_15 {dimension_numbers = #tpu.dot_dimension_numbers<[1], [0], [0], [1], [0, 0, 1, 1], [], []>} : vector<8x128xbf16>, vector<128x128xbf16>, vector<8x128xf32> -> vector<8x128xf32>
    %c384 = arith.constant 384 : index
    %c0_16 = arith.constant 0 : index
    %27 = vector.load %arg1[%c384, %c0_16] : memref<640x128xbf16, #tpu.memory_space<vmem>>, vector<128x128xbf16>
    %cst_17 = arith.constant dense<0.000000e+00> : vector<8x128xf32>
    %28 = tpu.matmul %8, %27, %cst_17 {dimension_numbers = #tpu.dot_dimension_numbers<[1], [0], [0], [1], [0, 0, 1, 1], [], []>} : vector<8x128xbf16>, vector<128x128xbf16>, vector<8x128xf32> -> vector<8x128xf32>
    %29 = arith.addf %26, %28 : vector<8x128xf32>
    %c3 = arith.constant 3 : index
    %c0_18 = arith.constant 0 : index
    %30 = vector.load %arg2[%c3, %c0_18] : memref<8x128xf32, #tpu.memory_space<vmem>>, vector<1x128xf32>
    %31 = vector.broadcast %30 : vector<1x128xf32> to vector<8x128xf32>
    %32 = arith.addf %29, %31 : vector<8x128xf32>
    %c0_19 = arith.constant 0 : index
    %c0_20 = arith.constant 0 : index
    %33 = vector.load %arg3[%c0_19, %c0_20] : memref<8x128xf32, #tpu.memory_space<vmem>>, vector<8x128xf32>
    tpu.vector_store %arg3[%c0_19, %c0_20], %32 {strides = array<i32>} : memref<8x128xf32, #tpu.memory_space<vmem>>, vector<8x128xf32>,
    return
  }
}

</mosaic_0001>

<llo_original>
// kernel: tpu_custom_call.1
$region0: #{tpu_custom_call.1}
  #allocation0 [shape = 'u32[]', space=smem, size = 0x4, offset = 0x4, fixed_abs, tag = 'smem constant byte address 0x4 - core index']
  #allocation1 [shape = 'u32[72,128]{1,0:T(1,128)}', space=vmem, size = 0x9000, scoped, tag = 'internal scratch']
  %s0 = inlined_call_operand.hbm [shape: bf16[8,128], index: 0, kind: input, shape index: {}]
  %s1 = inlined_call_operand.hbm [shape: bf16[640,128], index: 1, kind: input, shape index: {}]
  %s2 = inlined_call_operand.hbm [shape: f32[8,128], index: 2, kind: input, shape index: {}]
  %s3 = inlined_call_operand.hbm [shape: f32[8,128], index: 3, kind: output, shape index: {}]
  %s4 = sld [smem:[#allocation0]]
  $region34: #{tpu_custom_call.1} parent=0
    _
  %s6 = ssub.s32 1, %s4
  %s7 = scalar_select 0, %s6, %s4
  $region1: #{tpu_custom_call.1} parent=0
    #allocation2 [shape = 'u8[2048]{0}', space=vmem, size = 0x800, scoped, tag = 'input window, operand 0, single buffered']
    #allocation3 [shape = 's32[1]{0}', space=sflag, size = 0x4, scoped, tag = 'scoped memory for tpu_custom_call.1']
    #allocation4 [shape = 's32[1]{0}', space=sflag, size = 0x4, scoped, tag = 'scoped memory for tpu_custom_call.1']
    #allocation5 [shape = 'u8[163840]{0}', space=vmem, size = 0x28000, scoped, tag = 'input window, operand 1, single buffered']
    #allocation6 [shape = 's32[1]{0}', space=sflag, size = 0x4, scoped, tag = 'scoped memory for tpu_custom_call.1']
    #allocation7 [shape = 'u8[4096]{0}', space=vmem, size = 0x1000, scoped, tag = 'input window, operand 2, single buffered']
    #allocation8 [shape = 'u8[4096]{0}', space=vmem, size = 0x1000, scoped, tag = 'output window, operand 0, single buffered']
    %8 = vsyncpa [#allocation3], 0
    %9 = vsyncpa [#allocation6], 0
    %10 = vsyncpa [#allocation4], 0
    // Predicated region
    $region2: #{tpu_custom_call.1} parent=1 // pred_check
      _
    $region3: #{tpu_custom_call.1} parent=1 // pred_check_branch
      %12 = sbr.rel (0) target = $region5
    $region4: #{tpu_custom_call.1} parent=1 // pred_region
      %14 = vsyncadd [#allocation3], 0
      %s16 = sshll.u32 %s0, 4
      %s17 = int_to_ptr.hbm [resolvable:$true] %s16
      %s18 = sshll.u32 [#allocation2], 4
      %s19 = int_to_ptr.vmem [resolvable:$true] %s18
      %21 = dma.hbm_to_vmem [thread:$0]  %s17, 64, %s19, [#allocation3]
    $region5: #{tpu_custom_call.1} parent=1 // pred_fallthru
      _
    // Predicated region
    $region6: #{tpu_custom_call.1} parent=1 // pred_check
      _
    $region7: #{tpu_custom_call.1} parent=1 // pred_check_branch
      %23 = sbr.rel (0) target = $region9
    $region8: #{tpu_custom_call.1} parent=1 // pred_region
      %25 = vsyncadd [#allocation6], 0
      %s26 = sshll.u32 %s1, 4
      %s27 = int_to_ptr.hbm [resolvable:$true] %s26
      %s28 = sshll.u32 [#allocation5], 4
      %s29 = int_to_ptr.vmem [resolvable:$true] %s28
      %34 = dma.hbm_to_vmem [thread:$0]  %s27, 5120, %s29, [#allocation6], 64, 64, 4
    $region9: #{tpu_custom_call.1} parent=1 // pred_fallthru
      _
    // Predicated region
    $region10: #{tpu_custom_call.1} parent=1 // pred_check
      _
    $region11: #{tpu_custom_call.1} parent=1 // pred_check_branch
      %36 = sbr.rel (0) target = $region13
    $region12: #{tpu_custom_call.1} parent=1 // pred_region
      %38 = vsyncadd [#allocation6], 0
      %s40 = sshll.u32 %s2, 4
      %s41 = int_to_ptr.hbm [resolvable:$true] %s40
      %s42 = sshll.u32 [#allocation7], 4
      %s43 = int_to_ptr.vmem [resolvable:$true] %s42
      %45 = dma.hbm_to_vmem [thread:$0]  %s41, 128, %s43, [#allocation6]
    $region13: #{tpu_custom_call.1} parent=1 // pred_fallthru
      _
    // Predicated region
    $region14: #{tpu_custom_call.1} parent=1 // pred_check
      _
    $region15: #{tpu_custom_call.1} parent=1 // pred_check_branch
      %47 = sbr.rel (0) target = $region17
    $region16: #{tpu_custom_call.1} parent=1 // pred_region
      %49 = dma.done [#allocation3], 64
    $region17: #{tpu_custom_call.1} parent=1 // pred_fallthru
      _
    // Predicated region
    $region18: #{tpu_custom_call.1} parent=1 // pred_check
      _
    $region19: #{tpu_custom_call.1} parent=1 // pred_check_branch
      %51 = sbr.rel (0) target = $region21
    $region20: #{tpu_custom_call.1} parent=1 // pred_region
      %53 = dma.done [#allocation6], 5120
    $region21: #{tpu_custom_call.1} parent=1 // pred_fallthru
      _
    // Predicated region
    $region22: #{tpu_custom_call.1} parent=1 // pred_check
      _
    $region23: #{tpu_custom_call.1} parent=1 // pred_check_branch
      %55 = sbr.rel (0) target = $region25
    $region24: #{tpu_custom_call.1} parent=1 // pred_region
      %57 = dma.done [#allocation6], 128
    $region25: #{tpu_custom_call.1} parent=1 // pred_fallthru
      _
    %v58 = vld [vmem:[#allocation2] sm:$0xf]
    %v59 = vld [vmem:[#allocation5] sm:$0xf]
    %v60 = vld [vmem:[#allocation5 + $0x4] sm:$0xf]
    %v61 = vld [vmem:[#allocation5 + $0x8] sm:$0xf]
    %v62 = vld [vmem:[#allocation5 + $0xc] sm:$0xf]
    %v63 = vld [vmem:[#allocation5 + $0x10] sm:$0xf]
    %v64 = vld [vmem:[#allocation5 + $0x14] sm:$0xf]
    %v65 = vld [vmem:[#allocation5 + $0x18] sm:$0xf]
    %v66 = vld [vmem:[#allocation5 + $0x1c] sm:$0xf]
    %v67 = vld [vmem:[#allocation5 + $0x20] sm:$0xf]
    %v68 = vld [vmem:[#allocation5 + $0x24] sm:$0xf]
    %v69 = vld [vmem:[#allocation5 + $0x28] sm:$0xf]
    %v70 = vld [vmem:[#allocation5 + $0x2c] sm:$0xf]
    %v71 = vld [vmem:[#allocation5 + $0x30] sm:$0xf]
    %v72 = vld [vmem:[#allocation5 + $0x34] sm:$0xf]
    %v73 = vld [vmem:[#allocation5 + $0x38] sm:$0xf]
    %v74 = vld [vmem:[#allocation5 + $0x3c] sm:$0xf]
    %v75 = vld [vmem:[#allocation7] sm:$0x1]
    %v76 = vperm.slane %v75, 0
    %v93 = vunpack.c.l.b16 %v59
    %v94 = vunpack.c.l.b16 %v60
    %v95 = vunpack.c.l.b16 %v61
    %v96 = vunpack.c.l.b16 %v62
    %v97 = vunpack.c.l.b16 %v63
    %v98 = vunpack.c.l.b16 %v64
    %v99 = vunpack.c.l.b16 %v65
    %v100 = vunpack.c.l.b16 %v66
    %v101 = vunpack.c.l.b16 %v67
    %v102 = vunpack.c.l.b16 %v68
    %v103 = vunpack.c.l.b16 %v69
    %v104 = vunpack.c.l.b16 %v70
    %v105 = vunpack.c.l.b16 %v71
    %v106 = vunpack.c.l.b16 %v72
    %v107 = vunpack.c.l.b16 %v73
    %v108 = vunpack.c.l.b16 %v74
    %v109 = vpack.c.b16 %v94, %v93
    %v110 = vpack.c.b16 %v96, %v95
    %v111 = vpack.c.b16 %v98, %v97
    %v112 = vpack.c.b16 %v100, %v99
    %v113 = vpack.c.b16 %v102, %v101
    %v114 = vpack.c.b16 %v104, %v103
    %v115 = vpack.c.b16 %v106, %v105
    %v116 = vpack.c.b16 %v108, %v107
    %125 = vmatpush.bf16.msra.mxu0 %v116
    %126 = vmatpush.bf16.msra.mxu0 %v115
    %127 = vmatpush.bf16.msra.mxu0 %v114
    %128 = vmatpush.bf16.msra.mxu0 %v113
    %129 = vmatpush.bf16.msra.mxu0 %v112
    %130 = vmatpush.bf16.msra.mxu0 %v111
    %131 = vmatpush.bf16.msra.mxu0 %v110
    %132 = vmatpush.bf16.msra.mxu0 %v109
    %133 = vmatmul.bf16.gmra.mxu0 %v58
    %v134 = vpop.f32.mrf.mxu0
    %v135 = vadd.f32 %v76, %v134
    %v136 = vpop.f32.mrf.mxu0
    %137 = vdwg.mxu0
    %v138 = vmax.f32 %v135, 0.0
    %v139 = vpack.c.bf16 %v138, %v138
    %v140 = vld [vmem:[#allocation5 + $0x40] sm:$0xf]
    %v141 = vld [vmem:[#allocation5 + $0x44] sm:$0xf]
    %v142 = vld [vmem:[#allocation5 + $0x48] sm:$0xf]
    %v143 = vld [vmem:[#allocation5 + $0x4c] sm:$0xf]
    %v144 = vld [vmem:[#allocation5 + $0x50] sm:$0xf]
    %v145 = vld [vmem:[#allocation5 + $0x54] sm:$0xf]
    %v146 = vld [vmem:[#allocation5 + $0x58] sm:$0xf]
    %v147 = vld [vmem:[#allocation5 + $0x5c] sm:$0xf]
    %v148 = vld [vmem:[#allocation5 + $0x60] sm:$0xf]
    %v149 = vld [vmem:[#allocation5 + $0x64] sm:$0xf]
    %v150 = vld [vmem:[#allocation5 + $0x68] sm:$0xf]
    %v151 = vld [vmem:[#allocation5 + $0x6c] sm:$0xf]
    %v152 = vld [vmem:[#allocation5 + $0x70] sm:$0xf]
    %v153 = vld [vmem:[#allocation5 + $0x74] sm:$0xf]
    %v154 = vld [vmem:[#allocation5 + $0x78] sm:$0xf]
    %v155 = vld [vmem:[#allocation5 + $0x7c] sm:$0xf]
    %v156 = vld [vmem:[#allocation7 + $0x1] sm:$0x1]
    %v157 = vperm.slane %v156, 0
    %v174 = vunpack.c.l.b16 %v140
    %v175 = vunpack.c.l.b16 %v141
    %v176 = vunpack.c.l.b16 %v142
    %v177 = vunpack.c.l.b16 %v143
    %v178 = vunpack.c.l.b16 %v144
    %v179 = vunpack.c.l.b16 %v145
    %v180 = vunpack.c.l.b16 %v146
    %v181 = vunpack.c.l.b16 %v147
    %v182 = vunpack.c.l.b16 %v148
    %v183 = vunpack.c.l.b16 %v149
    %v184 = vunpack.c.l.b16 %v150
    %v185 = vunpack.c.l.b16 %v151
    %v186 = vunpack.c.l.b16 %v152
    %v187 = vunpack.c.l.b16 %v153
    %v188 = vunpack.c.l.b16 %v154
    %v189 = vunpack.c.l.b16 %v155
    %v190 = vpack.c.b16 %v175, %v174
    %v191 = vpack.c.b16 %v177, %v176
    %v192 = vpack.c.b16 %v179, %v178
    %v193 = vpack.c.b16 %v181, %v180
    %v194 = vpack.c.b16 %v183, %v182
    %v195 = vpack.c.b16 %v185, %v184
    %v196 = vpack.c.b16 %v187, %v186
    %v197 = vpack.c.b16 %v189, %v188
    %206 = vmatpush.bf16.msra.mxu0 %v197
    %207 = vmatpush.bf16.msra.mxu0 %v196
    %208 = vmatpush.bf16.msra.mxu0 %v195
    %209 = vmatpush.bf16.msra.mxu0 %v194
    %210 = vmatpush.bf16.msra.mxu0 %v193
    %211 = vmatpush.bf16.msra.mxu0 %v192
    %212 = vmatpush.bf16.msra.mxu0 %v191
    %213 = vmatpush.bf16.msra.mxu0 %v190
    %214 = vmatmul.bf16.gmra.mxu0 %v139
    %v215 = vpop.f32.mrf.mxu0
    %v216 = vadd.f32 %v157, %v215
    %v217 = vpop.f32.mrf.mxu0
    %218 = vdwg.mxu0
    %v219 = vmax.f32 %v216, 0.0
    %v220 = vpack.c.bf16 %v219, %v219
    %v221 = vld [vmem:[#allocation5 + $0x80] sm:$0xf]
    %v222 = vld [vmem:[#allocation5 + $0x84] sm:$0xf]
    %v223 = vld [vmem:[#allocation5 + $0x88] sm:$0xf]
    %v224 = vld [vmem:[#allocation5 + $0x8c] sm:$0xf]
    %v225 = vld [vmem:[#allocation5 + $0x90] sm:$0xf]
    %v226 = vld [vmem:[#allocation5 + $0x94] sm:$0xf]
    %v227 = vld [vmem:[#allocation5 + $0x98] sm:$0xf]
    %v228 = vld [vmem:[#allocation5 + $0x9c] sm:$0xf]
    %v229 = vld [vmem:[#allocation5 + $0xa0] sm:$0xf]
    %v230 = vld [vmem:[#allocation5 + $0xa4] sm:$0xf]
    %v231 = vld [vmem:[#allocation5 + $0xa8] sm:$0xf]
    %v232 = vld [vmem:[#allocation5 + $0xac] sm:$0xf]
    %v233 = vld [vmem:[#allocation5 + $0xb0] sm:$0xf]
    %v234 = vld [vmem:[#allocation5 + $0xb4] sm:$0xf]
    %v235 = vld [vmem:[#allocation5 + $0xb8] sm:$0xf]
    %v236 = vld [vmem:[#allocation5 + $0xbc] sm:$0xf]
    %v237 = vld [vmem:[#allocation7 + $0x2] sm:$0x1]
    %v238 = vperm.slane %v237, 0
    %v255 = vunpack.c.l.b16 %v221
    %v256 = vunpack.c.l.b16 %v222
    %v257 = vunpack.c.l.b16 %v223
    %v258 = vunpack.c.l.b16 %v224
    %v259 = vunpack.c.l.b16 %v225
    %v260 = vunpack.c.l.b16 %v226
    %v261 = vunpack.c.l.b16 %v227
    %v262 = vunpack.c.l.b16 %v228
    %v263 = vunpack.c.l.b16 %v229
    %v264 = vunpack.c.l.b16 %v230
    %v265 = vunpack.c.l.b16 %v231
    %v266 = vunpack.c.l.b16 %v232
    %v267 = vunpack.c.l.b16 %v233
    %v268 = vunpack.c.l.b16 %v234
    %v269 = vunpack.c.l.b16 %v235
    %v270 = vunpack.c.l.b16 %v236
    %v271 = vpack.c.b16 %v256, %v255
    %v272 = vpack.c.b16 %v258, %v257
    %v273 = vpack.c.b16 %v260, %v259
    %v274 = vpack.c.b16 %v262, %v261
    %v275 = vpack.c.b16 %v264, %v263
    %v276 = vpack.c.b16 %v266, %v265
    %v277 = vpack.c.b16 %v268, %v267
    %v278 = vpack.c.b16 %v270, %v269
    %287 = vmatpush.bf16.msra.mxu0 %v278
    %288 = vmatpush.bf16.msra.mxu0 %v277
    %289 = vmatpush.bf16.msra.mxu0 %v276
    %290 = vmatpush.bf16.msra.mxu0 %v275
    %291 = vmatpush.bf16.msra.mxu0 %v274
    %292 = vmatpush.bf16.msra.mxu0 %v273
    %293 = vmatpush.bf16.msra.mxu0 %v272
    %294 = vmatpush.bf16.msra.mxu0 %v271
    %295 = vmatmul.bf16.gmra.mxu0 %v220
    %v296 = vpop.f32.mrf.mxu0
    %v297 = vadd.f32 %v238, %v296
    %v298 = vpop.f32.mrf.mxu0
    %299 = vdwg.mxu0
    %v300 = vmax.f32 %v297, 0.0
    %v301 = vpack.c.bf16 %v300, %v300
    %v302 = vld [vmem:[#allocation5 + $0x100] sm:$0xf]
    %v303 = vld [vmem:[#allocation5 + $0x104] sm:$0xf]
    %v304 = vld [vmem:[#allocation5 + $0x108] sm:$0xf]
    %v305 = vld [vmem:[#allocation5 + $0x10c] sm:$0xf]
    %v306 = vld [vmem:[#allocation5 + $0x110] sm:$0xf]
    %v307 = vld [vmem:[#allocation5 + $0x114] sm:$0xf]
    %v308 = vld [vmem:[#allocation5 + $0x118] sm:$0xf]
    %v309 = vld [vmem:[#allocation5 + $0x11c] sm:$0xf]
    %v310 = vld [vmem:[#allocation5 + $0x120] sm:$0xf]
    %v311 = vld [vmem:[#allocation5 + $0x124] sm:$0xf]
    %v312 = vld [vmem:[#allocation5 + $0x128] sm:$0xf]
    %v313 = vld [vmem:[#allocation5 + $0x12c] sm:$0xf]
    %v314 = vld [vmem:[#allocation5 + $0x130] sm:$0xf]
    %v315 = vld [vmem:[#allocation5 + $0x134] sm:$0xf]
    %v316 = vld [vmem:[#allocation5 + $0x138] sm:$0xf]
    %v317 = vld [vmem:[#allocation5 + $0x13c] sm:$0xf]
    %v318 = vld [vmem:[#allocation5 + $0xc0] sm:$0xf]
    %v319 = vld [vmem:[#allocation5 + $0xc4] sm:$0xf]
    %v320 = vld [vmem:[#allocation5 + $0xc8] sm:$0xf]
    %v321 = vld [vmem:[#allocation5 + $0xcc] sm:$0xf]
    %v322 = vld [vmem:[#allocation5 + $0xd0] sm:$0xf]
    %v323 = vld [vmem:[#allocation5 + $0xd4] sm:$0xf]
    %v324 = vld [vmem:[#allocation5 + $0xd8] sm:$0xf]
    %v325 = vld [vmem:[#allocation5 + $0xdc] sm:$0xf]
    %v326 = vld [vmem:[#allocation5 + $0xe0] sm:$0xf]
    %v327 = vld [vmem:[#allocation5 + $0xe4] sm:$0xf]
    %v328 = vld [vmem:[#allocation5 + $0xe8] sm:$0xf]
    %v329 = vld [vmem:[#allocation5 + $0xec] sm:$0xf]
    %v330 = vld [vmem:[#allocation5 + $0xf0] sm:$0xf]
    %v331 = vld [vmem:[#allocation5 + $0xf4] sm:$0xf]
    %v332 = vld [vmem:[#allocation5 + $0xf8] sm:$0xf]
    %v333 = vld [vmem:[#allocation5 + $0xfc] sm:$0xf]
    %v350 = vunpack.c.l.b16 %v318
    %v351 = vunpack.c.l.b16 %v319
    %v352 = vunpack.c.l.b16 %v320
    %v353 = vunpack.c.l.b16 %v321
    %v354 = vunpack.c.l.b16 %v322
    %v355 = vunpack.c.l.b16 %v323
    %v356 = vunpack.c.l.b16 %v324
    %v357 = vunpack.c.l.b16 %v325
    %v358 = vunpack.c.l.b16 %v326
    %v359 = vunpack.c.l.b16 %v327
    %v360 = vunpack.c.l.b16 %v328
    %v361 = vunpack.c.l.b16 %v329
    %v362 = vunpack.c.l.b16 %v330
    %v363 = vunpack.c.l.b16 %v331
    %v364 = vunpack.c.l.b16 %v332
    %v365 = vunpack.c.l.b16 %v333
    %v366 = vpack.c.b16 %v351, %v350
    %v367 = vpack.c.b16 %v353, %v352
    %v368 = vpack.c.b16 %v355, %v354
    %v369 = vpack.c.b16 %v357, %v356
    %v370 = vpack.c.b16 %v359, %v358
    %v371 = vpack.c.b16 %v361, %v360
    %v372 = vpack.c.b16 %v363, %v362
    %v373 = vpack.c.b16 %v365, %v364
    %382 = vmatpush.bf16.msra.mxu0 %v373
    %383 = vmatpush.bf16.msra.mxu0 %v372
    %384 = vmatpush.bf16.msra.mxu0 %v371
    %385 = vmatpush.bf16.msra.mxu0 %v370
    %386 = vmatpush.bf16.msra.mxu0 %v369
    %387 = vmatpush.bf16.msra.mxu0 %v368
    %388 = vmatpush.bf16.msra.mxu0 %v367
    %389 = vmatpush.bf16.msra.mxu0 %v366
    %390 = vmatmul.bf16.gmra.mxu0 %v139
    %v391 = vpop.f32.mrf.mxu0
    %v392 = vadd.f32 0.0, %v391
    %v393 = vpop.f32.mrf.mxu0
    %394 = vdwg.mxu0
    %v411 = vunpack.c.l.b16 %v302
    %v412 = vunpack.c.l.b16 %v303
    %v413 = vunpack.c.l.b16 %v304
    %v414 = vunpack.c.l.b16 %v305
    %v415 = vunpack.c.l.b16 %v306
    %v416 = vunpack.c.l.b16 %v307
    %v417 = vunpack.c.l.b16 %v308
    %v418 = vunpack.c.l.b16 %v309
    %v419 = vunpack.c.l.b16 %v310
    %v420 = vunpack.c.l.b16 %v311
    %v421 = vunpack.c.l.b16 %v312
    %v422 = vunpack.c.l.b16 %v313
    %v423 = vunpack.c.l.b16 %v314
    %v424 = vunpack.c.l.b16 %v315
    %v425 = vunpack.c.l.b16 %v316
    %v426 = vunpack.c.l.b16 %v317
    %v427 = vpack.c.b16 %v412, %v411
    %v428 = vpack.c.b16 %v414, %v413
    %v429 = vpack.c.b16 %v416, %v415
    %v430 = vpack.c.b16 %v418, %v417
    %v431 = vpack.c.b16 %v420, %v419
    %v432 = vpack.c.b16 %v422, %v421
    %v433 = vpack.c.b16 %v424, %v423
    %v434 = vpack.c.b16 %v426, %v425
    %443 = vmatpush.bf16.msra.mxu0 %v434
    %444 = vmatpush.bf16.msra.mxu0 %v433
    %445 = vmatpush.bf16.msra.mxu0 %v432
    %446 = vmatpush.bf16.msra.mxu0 %v431
    %447 = vmatpush.bf16.msra.mxu0 %v430
    %448 = vmatpush.bf16.msra.mxu0 %v429
    %449 = vmatpush.bf16.msra.mxu0 %v428
    %450 = vmatpush.bf16.msra.mxu0 %v427
    %451 = vmatmul.bf16.gmra.mxu0 %v301
    %v452 = vpop.f32.mrf.mxu0
    %v453 = vadd.f32 %v392, %v452
    %v454 = vpop.f32.mrf.mxu0
    %455 = vdwg.mxu0
    %v456 = vld [vmem:[#allocation7 + $0x3] sm:$0x1]
    %v457 = vperm.slane %v456, 0
    %v458 = vadd.f32 %v453, %v457
    %459 = vst [vmem:[#allocation8] sm:$0xff] %v458
    // Predicated region
    $region26: #{tpu_custom_call.1} parent=1 // pred_check
      _
    $region27: #{tpu_custom_call.1} parent=1 // pred_check_branch
      %461 = sbr.rel (0) target = $region29
    $region28: #{tpu_custom_call.1} parent=1 // pred_region
      %463 = vsyncadd [#allocation4], 0
      %s465 = sshll.u32 [#allocation8], 4
      %s466 = int_to_ptr.vmem [resolvable:$true] %s465
      %s467 = sshll.u32 %s3, 4
      %s468 = int_to_ptr.hbm [resolvable:$true] %s467
      %470 = dma.vmem_to_hbm [thread:$0]  %s466, 128, %s468, [#allocation4]
    $region29: #{tpu_custom_call.1} parent=1 // pred_fallthru
      _
    // Predicated region
    $region30: #{tpu_custom_call.1} parent=1 // pred_check
      _
    $region31: #{tpu_custom_call.1} parent=1 // pred_check_branch
      %472 = sbr.rel (0) target = $region33
    $region32: #{tpu_custom_call.1} parent=1 // pred_region
      %474 = dma.done [#allocation4], 128
    $region33: #{tpu_custom_call.1} parent=1 // pred_fallthru
      _
    %475 = vsyncpa [#allocation3], 1
    %476 = vsyncpa [#allocation6], 1
    %477 = vsyncpa [#allocation4], 1

</llo_original>
